<compile_context>
chip_gen: v7x
topology: tpu7x:2x2x1
jax: 0.10.0
libtpu: 0.0.40
codegen_flags: <defaults>
</compile_context>

<pallas_src>
import functools
import numpy as np

import jax
import jax.numpy as jnp
from jax.experimental import pallas as pl
from jax.experimental.pallas import tpu as pltpu


# ----------------------------------------------------------------------------
# Noise schedule (matches set_new_noise_schedule with 'linear' betas).
# Tables live on device so a traced t can index them without recompiling.
# ----------------------------------------------------------------------------
def make_schedule_tables(n_timestep=2000, linear_start=1e-6, linear_end=1e-2):
    betas = np.linspace(linear_start, linear_end, n_timestep, dtype=np.float64)
    alphas = 1.0 - betas
    alphas_cumprod = np.cumprod(alphas, axis=0)
    alphas_cumprod_prev = np.append(1.0, alphas_cumprod[:-1])
    return dict(
        sqrt_alphas_cumprod_prev=jnp.asarray(
            np.sqrt(np.append(1.0, alphas_cumprod)), dtype=jnp.float32),
        posterior_mean_coef1=jnp.asarray(
            betas * np.sqrt(alphas_cumprod_prev) / (1.0 - alphas_cumprod),
            dtype=jnp.float32),
        posterior_mean_coef2=jnp.asarray(
            (1.0 - alphas_cumprod_prev) * np.sqrt(alphas) / (1.0 - alphas_cumprod),
            dtype=jnp.float32),
    )


# ----------------------------------------------------------------------------
# Fused Pallas kernel: p_losses forward pass on one TensorCore.
# ----------------------------------------------------------------------------
def _p_losses_kernel(coef_ref,      # SMEM (1,)     coef1[t] + coef2[t]
                     x_ref,         # VMEM (BC, N)  x_in['X']
                     cond_ref,      # VMEM (BC, N)  x_in['condition0']
                     a_ref,         # VMEM (BC, 1)  per-row continuous_sqrt_alpha_cumprod
                     perm_ref,      # VMEM (1, N)   int32 pixel permutation
                     gmean_ref,     # VMEM (BC, BC) group-mean matrix (1/(C*N) within batch)
                     w1_ref, b1_ref, g_ref, w2_ref, b2_ref,   # synthetic denoisor params
                     xnoisy_ref,    # VMEM (BC, N)  out
                     xrecon_ref,    # VMEM (BC, N)  out
                     loss_ref,      # SMEM (1, 1)   out (mean-reduced MSE)
                     *, batch, channels):
    x = x_ref[...]
    cond = cond_ref[...]
    bc, n = x.shape

    # 1) noise = (X - cond) minus its per-batch mean over (c, h, w).
    d = x - cond
    # gmean @ d gives the per-(batch, pixel) channel-mean scaled by 1/(C*N);
    # a lane reduce then yields the full per-batch mean broadcast to each row.
    batch_means = jnp.sum(
        jnp.dot(gmean_ref[...], d, preferred_element_type=jnp.float32),
        axis=1, keepdims=True)                                        # (BC, 1)
    noise = d - batch_means

    # 2) Pixel permutation (same perm for every b, c), as a one-hot matmul:
    #    out[:, j] = noise[:, perm[j]].  Robust TPU gather; uses the idle MXU.
    row_ids = jax.lax.broadcasted_iota(jnp.int32, (n, n), 0)
    pmat = (row_ids == perm_ref[...]).astype(jnp.float32)             # (N, N)
    noise_perm = jnp.dot(noise, pmat, preferred_element_type=jnp.float32)

    # 3) q_posterior mean with x_start == x_t == condition -> coef_sum * cond.
    coef_sum = coef_ref[0]
    x_cond = coef_sum * cond

    # 4) q_sample: a * x_cond + sqrt(1 - a^2) * noise   (a per batch, on EUP).
    a = a_ref[...]                                                    # (BC, 1)
    s = jnp.sqrt(jnp.maximum(1.0 - a * a, 0.0))
    x_noisy = a * x_cond + s * noise_perm
    xnoisy_ref[...] = x_noisy

    # 5) Denoisor + fused MSE accumulation.
    # TODO(synk): the real `denoisor` is an external nn.Module passed to
    #             __init__; this is a deterministic synthetic stand-in
    #             (noise-level-conditioned channel MLP, residual) with the
    #             same call signature denoisor(x_noisy, a).
    C = channels
    sq_sum = jnp.float32(0.0)
    for b in range(batch):                       # static unroll, B is tiny
        r0 = b * C
        xb = x_noisy[r0:r0 + C, :]                                    # (C, N)
        ab = a[r0:r0 + 1, :]                                          # (1, 1)
        h = jnp.dot(w1_ref[...], xb, preferred_element_type=jnp.float32)
        h = h + b1_ref[...] + ab * g_ref[...]
        h = jnp.maximum(h, 0.0)
        y = jnp.dot(w2_ref[...], h, preferred_element_type=jnp.float32)
        recon_b = xb + y + b2_ref[...]
        xrecon_ref[r0:r0 + C, :] = recon_b
        diff = recon_b - x[r0:r0 + C, :]
        sq_sum = sq_sum + jnp.sum(diff * diff)

    loss_ref[0, 0] = sq_sum * (1.0 / float(batch * C * n))


def _fused_p_losses_call(batch, channels, n_pixels):
    bc = batch * channels
    kernel = functools.partial(_p_losses_kernel, batch=batch, channels=channels)
    vmem = pl.BlockSpec(memory_space=pltpu.MemorySpace.VMEM)
    smem = pl.BlockSpec(memory_space=pltpu.MemorySpace.SMEM)
    return pl.pallas_call(
        kernel,
        out_shape=(jax.ShapeDtypeStruct((bc, n_pixels), jnp.float32),   # x_noisy
                   jax.ShapeDtypeStruct((bc, n_pixels), jnp.float32),   # x_recon
                   jax.ShapeDtypeStruct((1, 1), jnp.float32)),          # loss
        in_specs=[smem,               # coef_sum (1,)
                  vmem, vmem,         # x, cond          (BC, N)
                  vmem,               # a_rows           (BC, 1)
                  vmem,               # perm             (1, N) int32
                  vmem,               # gmean            (BC, BC)
                  vmem, vmem, vmem, vmem, vmem],   # w1, b1, g, w2, b2
        out_specs=(vmem, vmem, smem),
    )


# ----------------------------------------------------------------------------
# Forward pass (== GaussianDiffusion.forward -> p_losses).  jit-able with a
# traced t: shapes/coefficients never bake t, so one compile serves all steps.
# ----------------------------------------------------------------------------
def gaussian_diffusion_forward(x, cond, params, sched, t, key):
    B, C, H, W = x.shape
    N = H * W
    BC = B * C
    x2 = x.reshape(BC, N).astype(jnp.float32)
    c2 = cond.reshape(BC, N).astype(jnp.float32)

    k_alpha, k_perm = jax.random.split(key)
    t = jnp.asarray(t, jnp.int32)

    # continuous_sqrt_alpha_cumprod ~ U[sqrt_acp_prev[t-1], sqrt_acp_prev[t]), per batch
    lo = sched["sqrt_alphas_cumprod_prev"][t - 1]
    hi = sched["sqrt_alphas_cumprod_prev"][t]
    a = jax.random.uniform(k_alpha, (B,), jnp.float32, minval=lo, maxval=hi)
    a_rows = jnp.repeat(a, C).reshape(BC, 1)

    # q_posterior coefficient (x_start == x_t == condition): runtime SMEM scalar
    coef_sum = (sched["posterior_mean_coef1"][t] +
                sched["posterior_mean_coef2"][t]).reshape(1)

    # pixel permutation (same permutation across batch/channel, like torch.randperm)
    perm = jax.random.permutation(k_perm, N).astype(jnp.int32).reshape(1, N)

    # group-mean matrix: averages rows belonging to the same batch, /(C*N)
    group = jnp.arange(BC) // C
    gmean = (group[:, None] == group[None, :]).astype(jnp.float32) / float(C * N)

    x_noisy2, x_recon2, loss = _fused_p_losses_call(B, C, N)(
        coef_sum, x2, c2, a_rows, perm, gmean,
        params["w1"], params["b1"], params["g"], params["w2"], params["b2"])

    return dict(total_loss=loss[0, 0],
                x_recon=x_recon2.reshape(B, C, H, W),
                x_start=x,
                x_noisy=x_noisy2.reshape(B, C, H, W))


def init_denoisor_params(key, channels, hidden):
    k1, k2, k3, k4, k5 = jax.random.split(key, 5)
    return dict(
        w1=0.1 * jax.random.normal(k1, (hidden, channels), jnp.float32),
        b1=0.01 * jax.random.normal(k2, (hidden, 1), jnp.float32),
        g=0.1 * jax.random.normal(k3, (hidden, 1), jnp.float32),
        w2=0.1 * jax.random.normal(k4, (channels, hidden), jnp.float32),
        b2=0.01 * jax.random.normal(k5, (channels, 1), jnp.float32),
    )


if __name__ == "__main__":
    B, C, H, W = 2, 4, 16, 16
    hidden = 32

    key = jax.random.PRNGKey(0)
    kx, kc, kp, kf = jax.random.split(key, 4)

    x = jax.random.normal(kx, (B, C, H, W), jnp.float32)                    # x_in['X']
    cond = x + 0.1 * jax.random.normal(kc, (B, C, H, W), jnp.float32)       # x_in['condition0']

    params = init_denoisor_params(kp, C, hidden)
    sched = make_schedule_tables(n_timestep=2000, linear_start=1e-6, linear_end=1e-2)

    # deterministic stand-in for np.random.randint(1, 300); passed as a runtime
    # scalar so varying t never triggers a recompile of the fused kernel.
    t = jnp.int32(int(np.random.default_rng(0).integers(1, 300)))

    forward = jax.jit(gaussian_diffusion_forward)
    out = forward(x, cond, params, sched, t, kf)
    jax.block_until_ready(out["total_loss"])
    jax.block_until_ready(out["x_recon"])
    jax.block_until_ready(out["x_noisy"])

    assert out["x_recon"].shape == (B, C, H, W)
    assert out["x_noisy"].shape == (B, C, H, W)
    assert out["total_loss"].shape == ()
    assert bool(jnp.isfinite(out["total_loss"]))
    print("KERNEL_OK")
</pallas_src>

<mosaic_0001>
module attributes {stable_mosaic.version = 11 : i64} {
  func.func @_p_losses_kernel(%arg0: memref<1xf32, #tpu.memory_space<smem>>, %arg1: memref<8x256xf32, #tpu.memory_space<vmem>>, %arg2: memref<8x256xf32, #tpu.memory_space<vmem>>, %arg3: memref<8x1xf32, #tpu.memory_space<vmem>>, %arg4: memref<1x256xi32, #tpu.memory_space<vmem>>, %arg5: memref<8x8xf32, #tpu.memory_space<vmem>>, %arg6: memref<32x4xf32, #tpu.memory_space<vmem>>, %arg7: memref<32x1xf32, #tpu.memory_space<vmem>>, %arg8: memref<32x1xf32, #tpu.memory_space<vmem>>, %arg9: memref<4x32xf32, #tpu.memory_space<vmem>>, %arg10: memref<4x1xf32, #tpu.memory_space<vmem>>, %arg11: memref<8x256xf32, #tpu.memory_space<vmem>>, %arg12: memref<8x256xf32, #tpu.memory_space<vmem>>, %arg13: memref<1x1xf32, #tpu.memory_space<smem>>) attributes {dimension_semantics = [], scalar_prefetch = 0 : i64, scratch_operands = 0 : i64, tpu.core_type = #tpu.core_type<tc>} {
    %c0 = arith.constant 0 : index
    %c0_0 = arith.constant 0 : index
    %0 = vector.load %arg1[%c0, %c0_0] : memref<8x256xf32, #tpu.memory_space<vmem>>, vector<8x256xf32>
    %c0_1 = arith.constant 0 : index
    %c0_2 = arith.constant 0 : index
    %1 = vector.load %arg2[%c0_1, %c0_2] : memref<8x256xf32, #tpu.memory_space<vmem>>, vector<8x256xf32>
    %2 = arith.subf %0, %1 : vector<8x256xf32>
    %c0_3 = arith.constant 0 : index
    %c0_4 = arith.constant 0 : index
    %3 = vector.load %arg5[%c0_3, %c0_4] : memref<8x8xf32, #tpu.memory_space<vmem>>, vector<8x8xf32>
    %cst = arith.constant dense<0.000000e+00> : vector<8x256xf32>
    %4 = tpu.matmul %3, %2, %cst {dimension_numbers = #tpu.dot_dimension_numbers<[1], [0], [0], [1], [0, 0, 1, 1], [], []>} : vector<8x8xf32>, vector<8x256xf32>, vector<8x256xf32> -> vector<8x256xf32>
    %cst_5 = arith.constant dense<0.000000e+00> : vector<8xf32>
    %5 = vector.multi_reduction <add>, %4, %cst_5 [1] : vector<8x256xf32> to vector<8xf32>
    %6 = vector.shape_cast %5 : vector<8xf32> to vector<8x1xf32>
    %7 = vector.broadcast %6 : vector<8x1xf32> to vector<8x256xf32>
    %8 = arith.subf %2, %7 : vector<8x256xf32>
    %9 = tpu.iota {dimensions = array<i32: 0>} : vector<256x256xi32>
    %c0_6 = arith.constant 0 : index
    %c0_7 = arith.constant 0 : index
    %10 = vector.load %arg4[%c0_6, %c0_7] : memref<1x256xi32, #tpu.memory_space<vmem>>, vector<1x256xi32>
    %11 = vector.broadcast %10 : vector<1x256xi32> to vector<256x256xi32>
    %12 = arith.cmpi eq, %9, %11 : vector<256x256xi32>
    %13 = arith.extui %12 : vector<256x256xi1> to vector<256x256xi32>
    %14 = arith.sitofp %13 : vector<256x256xi32> to vector<256x256xf32>
    %cst_8 = arith.constant dense<0.000000e+00> : vector<8x256xf32>
    %15 = tpu.matmul %8, %14, %cst_8 {dimension_numbers = #tpu.dot_dimension_numbers<[1], [0], [0], [1], [0, 0, 1, 1], [], []>} : vector<8x256xf32>, vector<256x256xf32>, vector<8x256xf32> -> vector<8x256xf32>
    %c0_9 = arith.constant 0 : index
    %16 = memref.load %arg0[%c0_9] : memref<1xf32, #tpu.memory_space<smem>>
    %17 = vector.broadcast %16 : f32 to vector<8x256xf32>
    %18 = arith.mulf %17, %1 : vector<8x256xf32>
    %c0_10 = arith.constant 0 : index
    %c0_11 = arith.constant 0 : index
    %19 = vector.load %arg3[%c0_10, %c0_11] : memref<8x1xf32, #tpu.memory_space<vmem>>, vector<8x1xf32>
    %20 = arith.mulf %19, %19 : vector<8x1xf32>
    %cst_12 = arith.constant 1.000000e+00 : f32
    %21 = vector.broadcast %cst_12 : f32 to vector<8x1xf32>
    %22 = arith.subf %21, %20 : vector<8x1xf32>
    %cst_13 = arith.constant 0.000000e+00 : f32
    %23 = vector.broadcast %cst_13 : f32 to vector<8x1xf32>
    %24 = arith.maximumf %22, %23 : vector<8x1xf32>
    %25 = math.sqrt %24 : vector<8x1xf32>
    %26 = vector.broadcast %19 : vector<8x1xf32> to vector<8x256xf32>
    %27 = arith.mulf %26, %18 : vector<8x256xf32>
    %28 = vector.broadcast %25 : vector<8x1xf32> to vector<8x256xf32>
    %29 = arith.mulf %28, %15 : vector<8x256xf32>
    %30 = arith.addf %27, %29 : vector<8x256xf32>
    %c0_14 = arith.constant 0 : index
    %c0_15 = arith.constant 0 : index
    %31 = vector.load %arg11[%c0_14, %c0_15] : memref<8x256xf32, #tpu.memory_space<vmem>>, vector<8x256xf32>
    tpu.vector_store %arg11[%c0_14, %c0_15], %30 {strides = array<i32>} : memref<8x256xf32, #tpu.memory_space<vmem>>, vector<8x256xf32>,
    %32 = vector.extract_strided_slice %30 {offsets = [0, 0], sizes = [4, 256], strides = [1, 1]} : vector<8x256xf32> to vector<4x256xf32>
    %33 = vector.extract_strided_slice %19 {offsets = [0, 0], sizes = [1, 1], strides = [1, 1]} : vector<8x1xf32> to vector<1x1xf32>
    %c0_16 = arith.constant 0 : index
    %c0_17 = arith.constant 0 : index
    %34 = vector.load %arg6[%c0_16, %c0_17] : memref<32x4xf32, #tpu.memory_space<vmem>>, vector<32x4xf32>
    %cst_18 = arith.constant dense<0.000000e+00> : vector<32x256xf32>
    %35 = tpu.matmul %34, %32, %cst_18 {dimension_numbers = #tpu.dot_dimension_numbers<[1], [0], [0], [1], [0, 0, 1, 1], [], []>} : vector<32x4xf32>, vector<4x256xf32>, vector<32x256xf32> -> vector<32x256xf32>
    %c0_19 = arith.constant 0 : index
    %c0_20 = arith.constant 0 : index
    %36 = vector.load %arg7[%c0_19, %c0_20] : memref<32x1xf32, #tpu.memory_space<vmem>>, vector<32x1xf32>
    %37 = vector.broadcast %36 : vector<32x1xf32> to vector<32x256xf32>
    %38 = arith.addf %35, %37 : vector<32x256xf32>
    %c0_21 = arith.constant 0 : index
    %c0_22 = arith.constant 0 : index
    %39 = vector.load %arg8[%c0_21, %c0_22] : memref<32x1xf32, #tpu.memory_space<vmem>>, vector<32x1xf32>
    %40 = vector.broadcast %33 : vector<1x1xf32> to vector<32x1xf32>
    %41 = arith.mulf %40, %39 : vector<32x1xf32>
    %42 = vector.broadcast %41 : vector<32x1xf32> to vector<32x256xf32>
    %43 = arith.addf %38, %42 : vector<32x256xf32>
    %cst_23 = arith.constant 0.000000e+00 : f32
    %44 = vector.broadcast %cst_23 : f32 to vector<32x256xf32>
    %45 = arith.maximumf %43, %44 : vector<32x256xf32>
    %c0_24 = arith.constant 0 : index
    %c0_25 = arith.constant 0 : index
    %46 = vector.load %arg9[%c0_24, %c0_25] : memref<4x32xf32, #tpu.memory_space<vmem>>, vector<4x32xf32>
    %cst_26 = arith.constant dense<0.000000e+00> : vector<4x256xf32>
    %47 = tpu.matmul %46, %45, %cst_26 {dimension_numbers = #tpu.dot_dimension_numbers<[1], [0], [0], [1], [0, 0, 1, 1], [], []>} : vector<4x32xf32>, vector<32x256xf32>, vector<4x256xf32> -> vector<4x256xf32>
    %48 = arith.addf %32, %47 : vector<4x256xf32>
    %c0_27 = arith.constant 0 : index
    %c0_28 = arith.constant 0 : index
    %49 = vector.load %arg10[%c0_27, %c0_28] : memref<4x1xf32, #tpu.memory_space<vmem>>, vector<4x1xf32>
    %50 = vector.broadcast %49 : vector<4x1xf32> to vector<4x256xf32>
    %51 = arith.addf %48, %50 : vector<4x256xf32>
    %c0_29 = arith.constant 0 : index
    %c0_30 = arith.constant 0 : index
    %52 = vector.load %arg12[%c0_29, %c0_30] : memref<8x256xf32, #tpu.memory_space<vmem>>, vector<4x256xf32>
    tpu.vector_store %arg12[%c0_29, %c0_30], %51 {strides = array<i32>} : memref<8x256xf32, #tpu.memory_space<vmem>>, vector<4x256xf32>,
    %53 = vector.extract_strided_slice %0 {offsets = [0, 0], sizes = [4, 256], strides = [1, 1]} : vector<8x256xf32> to vector<4x256xf32>
    %54 = arith.subf %51, %53 : vector<4x256xf32>
    %55 = arith.mulf %54, %54 : vector<4x256xf32>
    %56 = vector.shape_cast %55 : vector<4x256xf32> to vector<1x4x256xf32>
    %cst_31 = arith.constant dense<0.000000e+00> : vector<1xf32>
    %57 = vector.multi_reduction <add>, %56, %cst_31 [1, 2] : vector<1x4x256xf32> to vector<1xf32>
    %58 = vector.shape_cast %57 : vector<1xf32> to vector<1x1x1xf32>
    %59 = vector.extract %58[0, 0, 0] : f32 from vector<1x1x1xf32>
    %cst_32 = arith.constant 0.000000e+00 : f32
    %60 = arith.addf %cst_32, %59 : f32
    %61 = vector.extract_strided_slice %30 {offsets = [4, 0], sizes = [4, 256], strides = [1, 1]} : vector<8x256xf32> to vector<4x256xf32>
    %62 = vector.extract_strided_slice %19 {offsets = [4, 0], sizes = [1, 1], strides = [1, 1]} : vector<8x1xf32> to vector<1x1xf32>
    %c0_33 = arith.constant 0 : index
    %c0_34 = arith.constant 0 : index
    %63 = vector.load %arg6[%c0_33, %c0_34] : memref<32x4xf32, #tpu.memory_space<vmem>>, vector<32x4xf32>
    %cst_35 = arith.constant dense<0.000000e+00> : vector<32x256xf32>
    %64 = tpu.matmul %63, %61, %cst_35 {dimension_numbers = #tpu.dot_dimension_numbers<[1], [0], [0], [1], [0, 0, 1, 1], [], []>} : vector<32x4xf32>, vector<4x256xf32>, vector<32x256xf32> -> vector<32x256xf32>
    %c0_36 = arith.constant 0 : index
    %c0_37 = arith.constant 0 : index
    %65 = vector.load %arg7[%c0_36, %c0_37] : memref<32x1xf32, #tpu.memory_space<vmem>>, vector<32x1xf32>
    %66 = vector.broadcast %65 : vector<32x1xf32> to vector<32x256xf32>
    %67 = arith.addf %64, %66 : vector<32x256xf32>
    %c0_38 = arith.constant 0 : index
    %c0_39 = arith.constant 0 : index
    %68 = vector.load %arg8[%c0_38, %c0_39] : memref<32x1xf32, #tpu.memory_space<vmem>>, vector<32x1xf32>
    %69 = vector.broadcast %62 : vector<1x1xf32> to vector<32x1xf32>
    %70 = arith.mulf %69, %68 : vector<32x1xf32>
    %71 = vector.broadcast %70 : vector<32x1xf32> to vector<32x256xf32>
    %72 = arith.addf %67, %71 : vector<32x256xf32>
    %cst_40 = arith.constant 0.000000e+00 : f32
    %73 = vector.broadcast %cst_40 : f32 to vector<32x256xf32>
    %74 = arith.maximumf %72, %73 : vector<32x256xf32>
    %c0_41 = arith.constant 0 : index
    %c0_42 = arith.constant 0 : index
    %75 = vector.load %arg9[%c0_41, %c0_42] : memref<4x32xf32, #tpu.memory_space<vmem>>, vector<4x32xf32>
    %cst_43 = arith.constant dense<0.000000e+00> : vector<4x256xf32>
    %76 = tpu.matmul %75, %74, %cst_43 {dimension_numbers = #tpu.dot_dimension_numbers<[1], [0], [0], [1], [0, 0, 1, 1], [], []>} : vector<4x32xf32>, vector<32x256xf32>, vector<4x256xf32> -> vector<4x256xf32>
    %77 = arith.addf %61, %76 : vector<4x256xf32>
    %c0_44 = arith.constant 0 : index
    %c0_45 = arith.constant 0 : index
    %78 = vector.load %arg10[%c0_44, %c0_45] : memref<4x1xf32, #tpu.memory_space<vmem>>, vector<4x1xf32>
    %79 = vector.broadcast %78 : vector<4x1xf32> to vector<4x256xf32>
    %80 = arith.addf %77, %79 : vector<4x256xf32>
    %c4 = arith.constant 4 : index
    %c0_46 = arith.constant 0 : index
    %81 = vector.load %arg12[%c4, %c0_46] : memref<8x256xf32, #tpu.memory_space<vmem>>, vector<4x256xf32>
    tpu.vector_store %arg12[%c4, %c0_46], %80 {strides = array<i32>} : memref<8x256xf32, #tpu.memory_space<vmem>>, vector<4x256xf32>,
    %82 = vector.extract_strided_slice %0 {offsets = [4, 0], sizes = [4, 256], strides = [1, 1]} : vector<8x256xf32> to vector<4x256xf32>
    %83 = arith.subf %80, %82 : vector<4x256xf32>
    %84 = arith.mulf %83, %83 : vector<4x256xf32>
    %85 = vector.shape_cast %84 : vector<4x256xf32> to vector<1x4x256xf32>
    %cst_47 = arith.constant dense<0.000000e+00> : vector<1xf32>
    %86 = vector.multi_reduction <add>, %85, %cst_47 [1, 2] : vector<1x4x256xf32> to vector<1xf32>
    %87 = vector.shape_cast %86 : vector<1xf32> to vector<1x1x1xf32>
    %88 = vector.extract %87[0, 0, 0] : f32 from vector<1x1x1xf32>
    %89 = arith.addf %60, %88 : f32
    %cst_48 = arith.constant 4.8828125E-4 : f32
    %90 = arith.mulf %89, %cst_48 : f32
    %c0_49 = arith.constant 0 : index
    %c0_50 = arith.constant 0 : index
    %91 = memref.load %arg13[%c0_49, %c0_50] : memref<1x1xf32, #tpu.memory_space<smem>>
    memref.store %90, %arg13[%c0_49, %c0_50] : memref<1x1xf32, #tpu.memory_space<smem>>
    return
  }
}

</mosaic_0001>

<llo_original>
// kernel: gaussian_diffusion_forward.17
$region0: #{gaussian_diffusion_forward.17}
  #allocation0 [shape = 'u32[]', space=smem, size = 0x4, offset = 0x4, fixed_abs, tag = 'smem constant byte address 0x4 - core index']
  #allocation1 [shape = 'u32[144,128]{1,0:T(1,128)}', space=vmem, size = 0x12000, scoped, tag = 'internal scratch']
  #allocation2 [shape = 'f32[1]{0:T(128)S(6)}', space=smem, size = 0x200, scoped, tag = 'scoped memory for gaussian_diffusion_forward.17']
  %s0 = inlined_call_operand.<no memory space> [shape: f32[1], index: 0, kind: input, shape index: {}]
  %s1 = inlined_call_operand.vmem [shape: f32[8,256], index: 1, kind: input, shape index: {}]
  %s2 = inlined_call_operand.vmem [shape: f32[8,256], index: 2, kind: input, shape index: {}]
  %s3 = inlined_call_operand.vmem [shape: f32[8,1], index: 3, kind: input, shape index: {}]
  %s4 = inlined_call_operand.vmem [shape: s32[1,256], index: 4, kind: input, shape index: {}]
  %s5 = inlined_call_operand.vmem [shape: f32[8,8], index: 5, kind: input, shape index: {}]
  %s6 = inlined_call_operand.vmem [shape: f32[32,4], index: 6, kind: input, shape index: {}]
  %s7 = inlined_call_operand.vmem [shape: f32[32,1], index: 7, kind: input, shape index: {}]
  %s8 = inlined_call_operand.vmem [shape: f32[32,1], index: 8, kind: input, shape index: {}]
  %s9 = inlined_call_operand.vmem [shape: f32[4,32], index: 9, kind: input, shape index: {}]
  %s10 = inlined_call_operand.vmem [shape: f32[4,1], index: 10, kind: input, shape index: {}]
  %s11 = inlined_call_operand.vmem [shape: f32[8,256], index: 11, kind: output, shape index: {0}]
  %s12 = inlined_call_operand.vmem [shape: f32[8,256], index: 12, kind: output, shape index: {1}]
  %s13 = inlined_call_operand.hbm [shape: f32[1,1], index: 13, kind: output, shape index: {2}]
  %14 = xla_tuple %s11, %s12, %s13
  %s15 = sld [smem:[#allocation0]]
  $region70: #{gaussian_diffusion_forward.17} parent=0
    _
  %s17 = ssub.s32 1, %s15
  %s18 = scalar_select 0, %s17, %s15
  %19 = sst [smem:[#allocation2]] %s0
  $region1: #{gaussian_diffusion_forward.17} parent=0
    #allocation3 [shape = 'u8[512]{0}', space=smem, size = 0x200, scoped, tag = 'output window, operand 2, single buffered']
    #allocation4 [shape = 's32[1]{0}', space=sflag, size = 0x4, scoped, tag = 'scoped memory for gaussian_diffusion_forward.17']
    %20 = vsyncpa [#allocation4], 0
    // Predicated region
    $region2: #{gaussian_diffusion_forward.17} parent=1 // pred_check
      _
    $region3: #{gaussian_diffusion_forward.17} parent=1 // pred_check_branch
      %22 = sbr.rel (0) target = $region5
    $region4: #{gaussian_diffusion_forward.17} parent=1 // pred_region
      _
    $region5: #{gaussian_diffusion_forward.17} parent=1 // pred_fallthru
      _
    // Predicated region
    $region6: #{gaussian_diffusion_forward.17} parent=1 // pred_check
      _
    $region7: #{gaussian_diffusion_forward.17} parent=1 // pred_check_branch
      %24 = sbr.rel (0) target = $region9
    $region8: #{gaussian_diffusion_forward.17} parent=1 // pred_region
      _
    $region9: #{gaussian_diffusion_forward.17} parent=1 // pred_fallthru
      _
    // Predicated region
    $region10: #{gaussian_diffusion_forward.17} parent=1 // pred_check
      _
    $region11: #{gaussian_diffusion_forward.17} parent=1 // pred_check_branch
      %26 = sbr.rel (0) target = $region13
    $region12: #{gaussian_diffusion_forward.17} parent=1 // pred_region
      _
    $region13: #{gaussian_diffusion_forward.17} parent=1 // pred_fallthru
      _
    // Predicated region
    $region14: #{gaussian_diffusion_forward.17} parent=1 // pred_check
      _
    $region15: #{gaussian_diffusion_forward.17} parent=1 // pred_check_branch
      %28 = sbr.rel (0) target = $region17
    $region16: #{gaussian_diffusion_forward.17} parent=1 // pred_region
      _
    $region17: #{gaussian_diffusion_forward.17} parent=1 // pred_fallthru
      _
    // Predicated region
    $region18: #{gaussian_diffusion_forward.17} parent=1 // pred_check
      _
    $region19: #{gaussian_diffusion_forward.17} parent=1 // pred_check_branch
      %30 = sbr.rel (0) target = $region21
    $region20: #{gaussian_diffusion_forward.17} parent=1 // pred_region
      _
    $region21: #{gaussian_diffusion_forward.17} parent=1 // pred_fallthru
      _
    // Predicated region
    $region22: #{gaussian_diffusion_forward.17} parent=1 // pred_check
      _
    $region23: #{gaussian_diffusion_forward.17} parent=1 // pred_check_branch
      %32 = sbr.rel (0) target = $region25
    $region24: #{gaussian_diffusion_forward.17} parent=1 // pred_region
      _
    $region25: #{gaussian_diffusion_forward.17} parent=1 // pred_fallthru
      _
    // Predicated region
    $region26: #{gaussian_diffusion_forward.17} parent=1 // pred_check
      _
    $region27: #{gaussian_diffusion_forward.17} parent=1 // pred_check_branch
      %34 = sbr.rel (0) target = $region29
    $region28: #{gaussian_diffusion_forward.17} parent=1 // pred_region
      _
    $region29: #{gaussian_diffusion_forward.17} parent=1 // pred_fallthru
      _
    // Predicated region
    $region30: #{gaussian_diffusion_forward.17} parent=1 // pred_check
      _
    $region31: #{gaussian_diffusion_forward.17} parent=1 // pred_check_branch
      %36 = sbr.rel (0) target = $region33
    $region32: #{gaussian_diffusion_forward.17} parent=1 // pred_region
      _
    $region33: #{gaussian_diffusion_forward.17} parent=1 // pred_fallthru
      _
    // Predicated region
    $region34: #{gaussian_diffusion_forward.17} parent=1 // pred_check
      _
    $region35: #{gaussian_diffusion_forward.17} parent=1 // pred_check_branch
      %38 = sbr.rel (0) target = $region37
    $region36: #{gaussian_diffusion_forward.17} parent=1 // pred_region
      _
    $region37: #{gaussian_diffusion_forward.17} parent=1 // pred_fallthru
      _
    // Predicated region
    $region38: #{gaussian_diffusion_forward.17} parent=1 // pred_check
      _
    $region39: #{gaussian_diffusion_forward.17} parent=1 // pred_check_branch
      %40 = sbr.rel (0) target = $region41
    $region40: #{gaussian_diffusion_forward.17} parent=1 // pred_region
      _
    $region41: #{gaussian_diffusion_forward.17} parent=1 // pred_fallthru
      _
    // Predicated region
    $region42: #{gaussian_diffusion_forward.17} parent=1 // pred_check
      _
    $region43: #{gaussian_diffusion_forward.17} parent=1 // pred_check_branch
      %42 = sbr.rel (0) target = $region45
    $region44: #{gaussian_diffusion_forward.17} parent=1 // pred_region
      _
    $region45: #{gaussian_diffusion_forward.17} parent=1 // pred_fallthru
      _
    %v43 = vld [vmem:[%s1] sm:$0xff]
    %v44 = vld [vmem:[%s1 + $0x8] sm:$0xff]
    %v45 = vld [vmem:[%s2] sm:$0xff]
    %v46 = vld [vmem:[%s2 + $0x8] sm:$0xff]
    %v47 = vsub.f32 %v43, %v45
    %v48 = vsub.f32 %v44, %v46
    %v49 = vld [vmem:[%s5] sm:$0xff]
    %vm50 = vcmask 64512
    %v52 = vsel %vm50, %v49, 0
    %54 = vmatprep.subr.mxu0 %v48
    %55 = vmatpush1.msra.mxu0 %v47
    %56 = vmatprep.subr.mxu0 0.0
    %57 = vmatpush1.msra.mxu0 0.0
    %58 = vmatprep.subr.mxu0 0.0
    %59 = vmatpush1.msra.mxu0 0.0
    %60 = vmatprep.subr.mxu0 0.0
    %61 = vmatpush1.msra.mxu0 0.0
    %62 = vmatprep.subr.mxu0 0.0
    %63 = vmatpush1.msra.mxu0 0.0
    %64 = vmatprep.subr.mxu0 0.0
    %65 = vmatpush1.msra.mxu0 0.0
    %66 = vmatprep.subr.mxu0 0.0
    %67 = vmatpush1.msra.mxu0 0.0
    %68 = vmatprep.subr.mxu0 0.0
    %69 = vmatpush1.msra.mxu0 0.0
    %70 = vmatprep.subr.mxu0 0.0
    %71 = vmatpush1.msra.mxu0 0.0
    %72 = vmatprep.subr.mxu0 0.0
    %73 = vmatpush1.msra.mxu0 0.0
    %74 = vmatprep.subr.mxu0 0.0
    %75 = vmatpush1.msra.mxu0 0.0
    %76 = vmatprep.subr.mxu0 0.0
    %77 = vmatpush1.msra.mxu0 0.0
    %78 = vmatprep.subr.mxu0 0.0
    %79 = vmatpush1.msra.mxu0 0.0
    %80 = vmatprep.subr.mxu0 0.0
    %81 = vmatpush1.msra.mxu0 0.0
    %82 = vmatprep.subr.mxu0 0.0
    %83 = vmatpush1.msra.mxu0 0.0
    %84 = vmatprep.subr.mxu0 0.0
    %85 = vmatpush1.msra.mxu0 0.0
    %86 = vmatprep.subr.mxu0 0.0
    %87 = vmatpush1.msra.mxu0 0.0
    %88 = vmatprep.subr.mxu0 0.0
    %89 = vmatpush1.msra.mxu0 0.0
    %90 = vmatprep.subr.mxu0 0.0
    %91 = vmatpush1.msra.mxu0 0.0
    %92 = vmatprep.subr.mxu0 0.0
    %93 = vmatpush1.msra.mxu0 0.0
    %94 = vmatprep.subr.mxu0 0.0
    %95 = vmatpush1.msra.mxu0 0.0
    %96 = vmatprep.subr.mxu0 0.0
    %97 = vmatpush1.msra.mxu0 0.0
    %98 = vmatprep.subr.mxu0 0.0
    %99 = vmatpush1.msra.mxu0 0.0
    %100 = vmatprep.subr.mxu0 0.0
    %101 = vmatpush1.msra.mxu0 0.0
    %102 = vmatprep.subr.mxu0 0.0
    %103 = vmatpush1.msra.mxu0 0.0
    %104 = vmatprep.subr.mxu0 0.0
    %105 = vmatpush1.msra.mxu0 0.0
    %106 = vmatprep.subr.mxu0 0.0
    %107 = vmatpush1.msra.mxu0 0.0
    %108 = vmatprep.subr.mxu0 0.0
    %109 = vmatpush1.msra.mxu0 0.0
    %110 = vmatprep.subr.mxu0 0.0
    %111 = vmatpush1.msra.mxu0 0.0
    %112 = vmatprep.subr.mxu0 0.0
    %113 = vmatpush1.msra.mxu0 0.0
    %114 = vmatprep.subr.mxu0 0.0
    %115 = vmatpush1.msra.mxu0 0.0
    %116 = vmatprep.subr.mxu0 0.0
    %117 = vmatpush1.msra.mxu0 0.0
    %118 = vmatprep.mubr.f32.mxu0 0.0
    %119 = vmatmul.mubr.f32.gmra.mrb[0].mxu0 %v52
    %v120 = vpop.f32.mrb[0].mxu0
    %v121 = vadd.f32 0.0, %v120
    %v122 = vpop.f32.mrb[0].mxu0
    %v123 = vadd.f32 0.0, %v122
    %124 = vdwg.mxu0
    %v125 = vadd.f32 %v121, %v123
    %126 = vadd.xlane.f32.xlu0 %v125
    %v127 = vpop.xlane.xlu0 %126
    %v128 = vsub.f32 %v47, %v127
    %v129 = vsub.f32 %v48, %v127
    %v130 = vlaneseq
    %v131 = vshrl.u32 %v130, 7
    %v132 = vadd.s32 %v131, 8
    %v133 = vadd.s32 %v131, 16
    %v134 = vadd.s32 %v131, 24
    %v135 = vadd.s32 %v131, 32
    %v136 = vadd.s32 %v131, 40
    %v137 = vadd.s32 %v131, 48
    %v138 = vadd.s32 %v131, 56
    %v139 = vadd.s32 %v131, 64
    %v140 = vadd.s32 %v131, 72
    %v141 = vadd.s32 %v131, 80
    %v142 = vadd.s32 %v131, 88
    %v143 = vadd.s32 %v131, 96
    %v144 = vadd.s32 %v131, 104
    %v145 = vadd.s32 %v131, 112
    %v146 = vadd.s32 %v131, 120
    %v147 = vadd.s32 %v131, 128
    %v148 = vadd.s32 %v131, 136
    %v149 = vadd.s32 %v131, 144
    %v150 = vadd.s32 %v131, 152
    %v151 = vadd.s32 %v131, 160
    %v152 = vadd.s32 %v131, 168
    %v153 = vadd.s32 %v131, 176
    %v154 = vadd.s32 %v131, 184
    %v155 = vadd.s32 %v131, 192
    %v156 = vadd.s32 %v131, 200
    %v157 = vadd.s32 %v131, 208
    %v158 = vadd.s32 %v131, 216
    %v159 = vadd.s32 %v131, 224
    %v160 = vadd.s32 %v131, 232
    %v161 = vadd.s32 %v131, 240
    %v162 = vadd.s32 %v131, 248
    %v163 = vld [vmem:[%s4] sm:$0x3]
    %v164 = vlaneseq
    %v165 = vshrl.u32 %v164, 7
    %v166 = vsub.s32 0, %v165
    %v167 = vrot.slane %v163, %v166
    %v168 = vlaneseq
    %v169 = vshrl.u32 %v168, 7
    %v170 = vsub.s32 1, %v169
    %v171 = vrot.slane %v163, %v170
    %vm172 = vcmp.eq.s32.totalorder %v131, %v167
    %vm173 = vcmp.eq.s32.totalorder %v131, %v171
    %vm174 = vcmp.eq.s32.totalorder %v132, %v167
    %vm175 = vcmp.eq.s32.totalorder %v132, %v171
    %vm176 = vcmp.eq.s32.totalorder %v133, %v167
    %vm177 = vcmp.eq.s32.totalorder %v133, %v171
    %vm178 = vcmp.eq.s32.totalorder %v134, %v167
    %vm179 = vcmp.eq.s32.totalorder %v134, %v171
    %vm180 = vcmp.eq.s32.totalorder %v135, %v167
    %vm181 = vcmp.eq.s32.totalorder %v135, %v171
    %vm182 = vcmp.eq.s32.totalorder %v136, %v167
    %vm183 = vcmp.eq.s32.totalorder %v136, %v171
    %vm184 = vcmp.eq.s32.totalorder %v137, %v167
    %vm185 = vcmp.eq.s32.totalorder %v137, %v171
    %vm186 = vcmp.eq.s32.totalorder %v138, %v167
    %vm187 = vcmp.eq.s32.totalorder %v138, %v171
    %vm188 = vcmp.eq.s32.totalorder %v139, %v167
    %vm189 = vcmp.eq.s32.totalorder %v139, %v171
    %vm190 = vcmp.eq.s32.totalorder %v140, %v167
    %vm191 = vcmp.eq.s32.totalorder %v140, %v171
    %vm192 = vcmp.eq.s32.totalorder %v141, %v167
    %vm193 = vcmp.eq.s32.totalorder %v141, %v171
    %vm194 = vcmp.eq.s32.totalorder %v142, %v167
    %vm195 = vcmp.eq.s32.totalorder %v142, %v171
    %vm196 = vcmp.eq.s32.totalorder %v143, %v167
    %vm197 = vcmp.eq.s32.totalorder %v143, %v171
    %vm198 = vcmp.eq.s32.totalorder %v144, %v167
    %vm199 = vcmp.eq.s32.totalorder %v144, %v171
    %vm200 = vcmp.eq.s32.totalorder %v145, %v167
    %vm201 = vcmp.eq.s32.totalorder %v145, %v171
    %vm202 = vcmp.eq.s32.totalorder %v146, %v167
    %vm203 = vcmp.eq.s32.totalorder %v146, %v171
    %vm204 = vcmp.eq.s32.totalorder %v147, %v167
    %vm205 = vcmp.eq.s32.totalorder %v147, %v171
    %vm206 = vcmp.eq.s32.totalorder %v148, %v167
    %vm207 = vcmp.eq.s32.totalorder %v148, %v171
    %vm208 = vcmp.eq.s32.totalorder %v149, %v167
    %vm209 = vcmp.eq.s32.totalorder %v149, %v171
    %vm210 = vcmp.eq.s32.totalorder %v150, %v167
    %vm211 = vcmp.eq.s32.totalorder %v150, %v171
    %vm212 = vcmp.eq.s32.totalorder %v151, %v167
    %vm213 = vcmp.eq.s32.totalorder %v151, %v171
    %vm214 = vcmp.eq.s32.totalorder %v152, %v167
    %vm215 = vcmp.eq.s32.totalorder %v152, %v171
    %vm216 = vcmp.eq.s32.totalorder %v153, %v167
    %vm217 = vcmp.eq.s32.totalorder %v153, %v171
    %vm218 = vcmp.eq.s32.totalorder %v154, %v167
    %vm219 = vcmp.eq.s32.totalorder %v154, %v171
    %vm220 = vcmp.eq.s32.totalorder %v155, %v167
    %vm221 = vcmp.eq.s32.totalorder %v155, %v171
    %vm222 = vcmp.eq.s32.totalorder %v156, %v167
    %vm223 = vcmp.eq.s32.totalorder %v156, %v171
    %vm224 = vcmp.eq.s32.totalorder %v157, %v167
    %vm225 = vcmp.eq.s32.totalorder %v157, %v171
    %vm226 = vcmp.eq.s32.totalorder %v158, %v167
    %vm227 = vcmp.eq.s32.totalorder %v158, %v171
    %vm228 = vcmp.eq.s32.totalorder %v159, %v167
    %vm229 = vcmp.eq.s32.totalorder %v159, %v171
    %vm230 = vcmp.eq.s32.totalorder %v160, %v167
    %vm231 = vcmp.eq.s32.totalorder %v160, %v171
    %vm232 = vcmp.eq.s32.totalorder %v161, %v167
    %vm233 = vcmp.eq.s32.totalorder %v161, %v171
    %vm234 = vcmp.eq.s32.totalorder %v162, %v167
    %vm235 = vcmp.eq.s32.totalorder %v162, %v171
    %v236 = vsel %vm172, 1, 0
    %v237 = vsel %vm173, 1, 0
    %v238 = vsel %vm174, 1, 0
    %v239 = vsel %vm175, 1, 0
    %v240 = vsel %vm176, 1, 0
    %v241 = vsel %vm177, 1, 0
    %v242 = vsel %vm178, 1, 0
    %v243 = vsel %vm179, 1, 0
    %v244 = vsel %vm180, 1, 0
    %v245 = vsel %vm181, 1, 0
    %v246 = vsel %vm182, 1, 0
    %v247 = vsel %vm183, 1, 0
    %v248 = vsel %vm184, 1, 0
    %v249 = vsel %vm185, 1, 0
    %v250 = vsel %vm186, 1, 0
    %v251 = vsel %vm187, 1, 0
    %v252 = vsel %vm188, 1, 0
    %v253 = vsel %vm189, 1, 0
    %v254 = vsel %vm190, 1, 0
    %v255 = vsel %vm191, 1, 0
    %v256 = vsel %vm192, 1, 0
    %v257 = vsel %vm193, 1, 0
    %v258 = vsel %vm194, 1, 0
    %v259 = vsel %vm195, 1, 0
    %v260 = vsel %vm196, 1, 0
    %v261 = vsel %vm197, 1, 0
    %v262 = vsel %vm198, 1, 0
    %v263 = vsel %vm199, 1, 0
    %v264 = vsel %vm200, 1, 0
    %v265 = vsel %vm201, 1, 0
    %v266 = vsel %vm202, 1, 0
    %v267 = vsel %vm203, 1, 0
    %v268 = vsel %vm204, 1, 0
    %v269 = vsel %vm205, 1, 0
    %v270 = vsel %vm206, 1, 0
    %v271 = vsel %vm207, 1, 0
    %v272 = vsel %vm208, 1, 0
    %v273 = vsel %vm209, 1, 0
    %v274 = vsel %vm210, 1, 0
    %v275 = vsel %vm211, 1, 0
    %v276 = vsel %vm212, 1, 0
    %v277 = vsel %vm213, 1, 0
    %v278 = vsel %vm214, 1, 0
    %v279 = vsel %vm215, 1, 0
    %v280 = vsel %vm216, 1, 0
    %v281 = vsel %vm217, 1, 0
    %v282 = vsel %vm218, 1, 0
    %v283 = vsel %vm219, 1, 0
    %v284 = vsel %vm220, 1, 0
    %v285 = vsel %vm221, 1, 0
    %v286 = vsel %vm222, 1, 0
    %v287 = vsel %vm223, 1, 0
    %v288 = vsel %vm224, 1, 0
    %v289 = vsel %vm225, 1, 0
    %v290 = vsel %vm226, 1, 0
    %v291 = vsel %vm227, 1, 0
    %v292 = vsel %vm228, 1, 0
    %v293 = vsel %vm229, 1, 0
    %v294 = vsel %vm230, 1, 0
    %v295 = vsel %vm231, 1, 0
    %v296 = vsel %vm232, 1, 0
    %v297 = vsel %vm233, 1, 0
    %v298 = vsel %vm234, 1, 0
    %v299 = vsel %vm235, 1, 0
    %v300 = vcvt.s32.f32 %v236
    %v301 = vcvt.s32.f32 %v237
    %v302 = vcvt.s32.f32 %v238
    %v303 = vcvt.s32.f32 %v239
    %v304 = vcvt.s32.f32 %v240
    %v305 = vcvt.s32.f32 %v241
    %v306 = vcvt.s32.f32 %v242
    %v307 = vcvt.s32.f32 %v243
    %v308 = vcvt.s32.f32 %v244
    %v309 = vcvt.s32.f32 %v245
    %v310 = vcvt.s32.f32 %v246
    %v311 = vcvt.s32.f32 %v247
    %v312 = vcvt.s32.f32 %v248
    %v313 = vcvt.s32.f32 %v249
    %v314 = vcvt.s32.f32 %v250
    %v315 = vcvt.s32.f32 %v251
    %v316 = vcvt.s32.f32 %v252
    %v317 = vcvt.s32.f32 %v253
    %v318 = vcvt.s32.f32 %v254
    %v319 = vcvt.s32.f32 %v255
    %v320 = vcvt.s32.f32 %v256
    %v321 = vcvt.s32.f32 %v257
    %v322 = vcvt.s32.f32 %v258
    %v323 = vcvt.s32.f32 %v259
    %v324 = vcvt.s32.f32 %v260
    %v325 = vcvt.s32.f32 %v261
    %v326 = vcvt.s32.f32 %v262
    %v327 = vcvt.s32.f32 %v263
    %v328 = vcvt.s32.f32 %v264
    %v329 = vcvt.s32.f32 %v265
    %v330 = vcvt.s32.f32 %v266
    %v331 = vcvt.s32.f32 %v267
    %v332 = vcvt.s32.f32 %v268
    %v333 = vcvt.s32.f32 %v269
    %v334 = vcvt.s32.f32 %v270
    %v335 = vcvt.s32.f32 %v271
    %v336 = vcvt.s32.f32 %v272
    %v337 = vcvt.s32.f32 %v273
    %v338 = vcvt.s32.f32 %v274
    %v339 = vcvt.s32.f32 %v275
    %v340 = vcvt.s32.f32 %v276
    %v341 = vcvt.s32.f32 %v277
    %v342 = vcvt.s32.f32 %v278
    %v343 = vcvt.s32.f32 %v279
    %v344 = vcvt.s32.f32 %v280
    %v345 = vcvt.s32.f32 %v281
    %v346 = vcvt.s32.f32 %v282
    %v347 = vcvt.s32.f32 %v283
    %v348 = vcvt.s32.f32 %v284
    %v349 = vcvt.s32.f32 %v285
    %v350 = vcvt.s32.f32 %v286
    %v351 = vcvt.s32.f32 %v287
    %v352 = vcvt.s32.f32 %v288
    %v353 = vcvt.s32.f32 %v289
    %v354 = vcvt.s32.f32 %v290
    %v355 = vcvt.s32.f32 %v291
    %v356 = vcvt.s32.f32 %v292
    %v357 = vcvt.s32.f32 %v293
    %v358 = vcvt.s32.f32 %v294
    %v359 = vcvt.s32.f32 %v295
    %v360 = vcvt.s32.f32 %v296
    %v361 = vcvt.s32.f32 %v297
    %v362 = vcvt.s32.f32 %v298
    %v363 = vcvt.s32.f32 %v299
    %364 = vmatprep.subr.mxu0 %v301
    %365 = vmatpush1.msra.mxu0 %v300
    %366 = vmatprep.subr.mxu0 %v303
    %367 = vmatpush1.msra.mxu0 %v302
    %368 = vmatprep.subr.mxu0 %v305
    %369 = vmatpush1.msra.mxu0 %v304
    %370 = vmatprep.subr.mxu0 %v307
    %371 = vmatpush1.msra.mxu0 %v306
    %372 = vmatprep.subr.mxu0 %v309
    %373 = vmatpush1.msra.mxu0 %v308
    %374 = vmatprep.subr.mxu0 %v311
    %375 = vmatpush1.msra.mxu0 %v310
    %376 = vmatprep.subr.mxu0 %v313
    %377 = vmatpush1.msra.mxu0 %v312
    %378 = vmatprep.subr.mxu0 %v315
    %379 = vmatpush1.msra.mxu0 %v314
    %380 = vmatprep.subr.mxu0 %v317
    %381 = vmatpush1.msra.mxu0 %v316
    %382 = vmatprep.subr.mxu0 %v319
    %383 = vmatpush1.msra.mxu0 %v318
    %384 = vmatprep.subr.mxu0 %v321
    %385 = vmatpush1.msra.mxu0 %v320
    %386 = vmatprep.subr.mxu0 %v323
    %387 = vmatpush1.msra.mxu0 %v322
    %388 = vmatprep.subr.mxu0 %v325
    %389 = vmatpush1.msra.mxu0 %v324
    %390 = vmatprep.subr.mxu0 %v327
    %391 = vmatpush1.msra.mxu0 %v326
    %392 = vmatprep.subr.mxu0 %v329
    %393 = vmatpush1.msra.mxu0 %v328
    %394 = vmatprep.subr.mxu0 %v331
    %395 = vmatpush1.msra.mxu0 %v330
    %396 = vmatprep.subr.mxu0 %v333
    %397 = vmatpush1.msra.mxu0 %v332
    %398 = vmatprep.subr.mxu0 %v335
    %399 = vmatpush1.msra.mxu0 %v334
    %400 = vmatprep.subr.mxu0 %v337
    %401 = vmatpush1.msra.mxu0 %v336
    %402 = vmatprep.subr.mxu0 %v339
    %403 = vmatpush1.msra.mxu0 %v338
    %404 = vmatprep.subr.mxu0 %v341
    %405 = vmatpush1.msra.mxu0 %v340
    %406 = vmatprep.subr.mxu0 %v343
    %407 = vmatpush1.msra.mxu0 %v342
    %408 = vmatprep.subr.mxu0 %v345
    %409 = vmatpush1.msra.mxu0 %v344
    %410 = vmatprep.subr.mxu0 %v347
    %411 = vmatpush1.msra.mxu0 %v346
    %412 = vmatprep.subr.mxu0 %v349
    %413 = vmatpush1.msra.mxu0 %v348
    %414 = vmatprep.subr.mxu0 %v351
    %415 = vmatpush1.msra.mxu0 %v350
    %416 = vmatprep.subr.mxu0 %v353
    %417 = vmatpush1.msra.mxu0 %v352
    %418 = vmatprep.subr.mxu0 %v355
    %419 = vmatpush1.msra.mxu0 %v354
    %420 = vmatprep.subr.mxu0 %v357
    %421 = vmatpush1.msra.mxu0 %v356
    %422 = vmatprep.subr.mxu0 %v359
    %423 = vmatpush1.msra.mxu0 %v358
    %424 = vmatprep.subr.mxu0 %v361
    %425 = vmatpush1.msra.mxu0 %v360
    %426 = vmatprep.subr.mxu0 %v363
    %427 = vmatpush1.msra.mxu0 %v362
    %428 = vmatprep.mubr.f32.mxu0 %v129
    %429 = vmatmul.mubr.f32.gmra.mrb[0].mxu0 %v128
    %v430 = vpop.f32.mrb[0].mxu0
    %v431 = vadd.f32 0.0, %v430
    %v432 = vpop.f32.mrb[0].mxu0
    %v433 = vadd.f32 0.0, %v432
    %434 = vdwg.mxu0
    %s435 = sld [smem:[#allocation2]]
    %v436 = vstv %s435
    %v437 = vmul.f32 %v436, %v45
    %v438 = vmul.f32 %v436, %v46
    %v439 = vld [vmem:[%s3] sm:$0xff]
    %v440 = vmul.f32 %v439, %v439
    %v441 = vsub.f32 1.0, %v440
    %v442 = vmax.f32 %v441, 0.0
    %v443 = vrsqrt.pop %v442
    %v444 = vmul.f32 %v442, %v443
    %vm445 = vcmp.eq.f32.partialorder %v442, inf
    %v446 = vsel %vm445, %v442, %v444
    %vm447 = vcmp.eq.f32.partialorder %v442, 0.0
    %v448 = vand.u32 %v442, 2147483648
    %v449 = vsel %vm447, %v448, %v446
    %451 = vset.pattern.permute.xlu0 0
    %452 = vperm.xlu0 %451, %v439
    %v453 = vpop.permute.xlu0 %452
    %v455 = vmul.f32 %v453, %v437
    %v456 = vmul.f32 %v453, %v438
    %458 = vset.pattern.permute.xlu0 0
    %459 = vperm.xlu0 %458, %v449
    %v460 = vpop.permute.xlu0 %459
    %v462 = vmul.f32 %v460, %v431
    %v463 = vmul.f32 %v460, %v433
    %v464 = vadd.f32 %v455, %v462
    %v465 = vadd.f32 %v456, %v463
    %466 = vst [vmem:[%s11] sm:$0xff] %v464
    %467 = vst [vmem:[%s11 + $0x8] sm:$0xff] %v465
    %v468 = vld [vmem:[%s6] sm:$0xff]
    %v469 = vld [vmem:[%s6 + $0x8] sm:$0xff]
    %v470 = vld [vmem:[%s6 + $0x10] sm:$0xff]
    %v471 = vld [vmem:[%s6 + $0x18] sm:$0xff]
    %v472 = vld [vmem:[%s7] sm:$0xff]
    %v473 = vld [vmem:[%s7 + $0x8] sm:$0xff]
    %v474 = vld [vmem:[%s7 + $0x10] sm:$0xff]
    %v475 = vld [vmem:[%s7 + $0x18] sm:$0xff]
    %477 = vset.pattern.permute.xlu0 0
    %478 = vperm.xlu0 %477, %v472
    %v479 = vpop.permute.xlu0 %478
    %482 = vset.pattern.permute.xlu0 0
    %483 = vperm.xlu0 %482, %v473
    %v484 = vpop.permute.xlu0 %483
    %487 = vset.pattern.permute.xlu0 0
    %488 = vperm.xlu0 %487, %v474
    %v489 = vpop.permute.xlu0 %488
    %492 = vset.pattern.permute.xlu0 0
    %493 = vperm.xlu0 %492, %v475
    %v494 = vpop.permute.xlu0 %493
    %vm496 = vcmask 31744
    %v498 = vsel %vm496, %v468, 0
    %v501 = vsel %vm496, %v469, 0
    %v504 = vsel %vm496, %v470, 0
    %v507 = vsel %vm496, %v471, 0
    %vm509 = vcmask 1043456
    %v511 = vsel %vm509, %v464, 0
    %v514 = vsel %vm509, %v465, 0
    %516 = vmatprep.subr.mxu0 %v514
    %517 = vmatpush1.msra.mxu0 %v511
    %518 = vmatprep.subr.mxu0 0.0
    %519 = vmatpush1.msra.mxu0 0.0
    %520 = vmatprep.subr.mxu0 0.0
    %521 = vmatpush1.msra.mxu0 0.0
    %522 = vmatprep.subr.mxu0 0.0
    %523 = vmatpush1.msra.mxu0 0.0
    %524 = vmatprep.subr.mxu0 0.0
    %525 = vmatpush1.msra.mxu0 0.0
    %526 = vmatprep.subr.mxu0 0.0
    %527 = vmatpush1.msra.mxu0 0.0
    %528 = vmatprep.subr.mxu0 0.0
    %529 = vmatpush1.msra.mxu0 0.0
    %530 = vmatprep.subr.mxu0 0.0
    %531 = vmatpush1.msra.mxu0 0.0
    %532 = vmatprep.subr.mxu0 0.0
    %533 = vmatpush1.msra.mxu0 0.0
    %534 = vmatprep.subr.mxu0 0.0
    %535 = vmatpush1.msra.mxu0 0.0
    %536 = vmatprep.subr.mxu0 0.0
    %537 = vmatpush1.msra.mxu0 0.0
    %538 = vmatprep.subr.mxu0 0.0
    %539 = vmatpush1.msra.mxu0 0.0
    %540 = vmatprep.subr.mxu0 0.0
    %541 = vmatpush1.msra.mxu0 0.0
    %542 = vmatprep.subr.mxu0 0.0
    %543 = vmatpush1.msra.mxu0 0.0
    %544 = vmatprep.subr.mxu0 0.0
    %545 = vmatpush1.msra.mxu0 0.0
    %546 = vmatprep.subr.mxu0 0.0
    %547 = vmatpush1.msra.mxu0 0.0
    %548 = vmatprep.subr.mxu0 0.0
    %549 = vmatpush1.msra.mxu0 0.0
    %550 = vmatprep.subr.mxu0 0.0
    %551 = vmatpush1.msra.mxu0 0.0
    %552 = vmatprep.subr.mxu0 0.0
    %553 = vmatpush1.msra.mxu0 0.0
    %554 = vmatprep.subr.mxu0 0.0
    %555 = vmatpush1.msra.mxu0 0.0
    %556 = vmatprep.subr.mxu0 0.0
    %557 = vmatpush1.msra.mxu0 0.0
    %558 = vmatprep.subr.mxu0 0.0
    %559 = vmatpush1.msra.mxu0 0.0
    %560 = vmatprep.subr.mxu0 0.0
    %561 = vmatpush1.msra.mxu0 0.0
    %562 = vmatprep.subr.mxu0 0.0
    %563 = vmatpush1.msra.mxu0 0.0
    %564 = vmatprep.subr.mxu0 0.0
    %565 = vmatpush1.msra.mxu0 0.0
    %566 = vmatprep.subr.mxu0 0.0
    %567 = vmatpush1.msra.mxu0 0.0
    %568 = vmatprep.subr.mxu0 0.0
    %569 = vmatpush1.msra.mxu0 0.0
    %570 = vmatprep.subr.mxu0 0.0
    %571 = vmatpush1.msra.mxu0 0.0
    %572 = vmatprep.subr.mxu0 0.0
    %573 = vmatpush1.msra.mxu0 0.0
    %574 = vmatprep.subr.mxu0 0.0
    %575 = vmatpush1.msra.mxu0 0.0
    %576 = vmatprep.subr.mxu0 0.0
    %577 = vmatpush1.msra.mxu0 0.0
    %578 = vmatprep.subr.mxu0 0.0
    %579 = vmatpush1.msra.mxu0 0.0
    %580 = vmatprep.mubr.f32.mxu0 0.0
    %581 = vmatmul.mubr.f32.gmra.mrb[0].mxu0 %v498
    %v582 = vpop.f32.mrb[0].mxu0
    %v583 = vadd.f32 %v479, %v582
    %v584 = vpop.f32.mrb[0].mxu0
    %v585 = vadd.f32 %v479, %v584
    %586 = vmatprep.mubr.f32.mxu0 0.0
    %587 = vmatmul.mubr.f32.gmra.mrb[0].mxu0 %v501
    %v588 = vpop.f32.mrb[0].mxu0
    %v589 = vadd.f32 %v484, %v588
    %v590 = vpop.f32.mrb[0].mxu0
    %v591 = vadd.f32 %v484, %v590
    %592 = vmatprep.mubr.f32.mxu0 0.0
    %593 = vmatmul.mubr.f32.gmra.mrb[0].mxu0 %v504
    %v594 = vpop.f32.mrb[0].mxu0
    %v595 = vadd.f32 %v489, %v594
    %v596 = vpop.f32.mrb[0].mxu0
    %v597 = vadd.f32 %v489, %v596
    %598 = vmatprep.mubr.f32.mxu0 0.0
    %599 = vmatmul.mubr.f32.gmra.mrb[0].mxu0 %v507
    %v600 = vpop.f32.mrb[0].mxu0
    %v601 = vadd.f32 %v494, %v600
    %v602 = vpop.f32.mrb[0].mxu0
    %v603 = vadd.f32 %v494, %v602
    %604 = vdwg.mxu0
    %v605 = vld [vmem:[%s8] sm:$0xff]
    %v606 = vld [vmem:[%s8 + $0x8] sm:$0xff]
    %v607 = vld [vmem:[%s8 + $0x10] sm:$0xff]
    %v608 = vld [vmem:[%s8 + $0x18] sm:$0xff]
    %v609 = vlaneseq
    %v610 = vshrl.u32 %v609, 7
    %v611 = vsub.s32 0, %v610
    %v612 = vrot.slane %v439, %v611
    %v613 = vmul.f32 %v612, %v605
    %v614 = vmul.f32 %v612, %v606
    %v615 = vmul.f32 %v612, %v607
    %v616 = vmul.f32 %v612, %v608
    %618 = vset.pattern.permute.xlu0 0
    %619 = vperm.xlu0 %618, %v613
    %v620 = vpop.permute.xlu0 %619
    %623 = vset.pattern.permute.xlu0 0
    %624 = vperm.xlu0 %623, %v614
    %v625 = vpop.permute.xlu0 %624
    %628 = vset.pattern.permute.xlu0 0
    %629 = vperm.xlu0 %628, %v615
    %v630 = vpop.permute.xlu0 %629
    %633 = vset.pattern.permute.xlu0 0
    %634 = vperm.xlu0 %633, %v616
    %v635 = vpop.permute.xlu0 %634
    %v637 = vadd.f32 %v583, %v620
    %v638 = vadd.f32 %v585, %v620
    %v639 = vadd.f32 %v589, %v625
    %v640 = vadd.f32 %v591, %v625
    %v641 = vadd.f32 %v595, %v630
    %v642 = vadd.f32 %v597, %v630
    %v643 = vadd.f32 %v601, %v635
    %v644 = vadd.f32 %v603, %v635
    %v645 = vmax.f32 %v637, 0.0
    %v646 = vmax.f32 %v638, 0.0
    %v647 = vmax.f32 %v639, 0.0
    %v648 = vmax.f32 %v640, 0.0
    %v649 = vmax.f32 %v641, 0.0
    %v650 = vmax.f32 %v642, 0.0
    %v651 = vmax.f32 %v643, 0.0
    %v652 = vmax.f32 %v644, 0.0
    %v653 = vld [vmem:[%s9] sm:$0xf]
    %vm654 = vcmask 261120
    %v656 = vsel %vm654, %v653, 0
    %658 = vmatprep.subr.mxu0 %v646
    %659 = vmatpush1.msra.mxu0 %v645
    %660 = vmatprep.subr.mxu0 %v648
    %661 = vmatpush1.msra.mxu0 %v647
    %662 = vmatprep.subr.mxu0 %v650
    %663 = vmatpush1.msra.mxu0 %v649
    %664 = vmatprep.subr.mxu0 %v652
    %665 = vmatpush1.msra.mxu0 %v651
    %666 = vmatprep.subr.mxu0 0.0
    %667 = vmatpush1.msra.mxu0 0.0
    %668 = vmatprep.subr.mxu0 0.0
    %669 = vmatpush1.msra.mxu0 0.0
    %670 = vmatprep.subr.mxu0 0.0
    %671 = vmatpush1.msra.mxu0 0.0
    %672 = vmatprep.subr.mxu0 0.0
    %673 = vmatpush1.msra.mxu0 0.0
    %674 = vmatprep.subr.mxu0 0.0
    %675 = vmatpush1.msra.mxu0 0.0
    %676 = vmatprep.subr.mxu0 0.0
    %677 = vmatpush1.msra.mxu0 0.0
    %678 = vmatprep.subr.mxu0 0.0
    %679 = vmatpush1.msra.mxu0 0.0
    %680 = vmatprep.subr.mxu0 0.0
    %681 = vmatpush1.msra.mxu0 0.0
    %682 = vmatprep.subr.mxu0 0.0
    %683 = vmatpush1.msra.mxu0 0.0
    %684 = vmatprep.subr.mxu0 0.0
    %685 = vmatpush1.msra.mxu0 0.0
    %686 = vmatprep.subr.mxu0 0.0
    %687 = vmatpush1.msra.mxu0 0.0
    %688 = vmatprep.subr.mxu0 0.0
    %689 = vmatpush1.msra.mxu0 0.0
    %690 = vmatprep.subr.mxu0 0.0
    %691 = vmatpush1.msra.mxu0 0.0
    %692 = vmatprep.subr.mxu0 0.0
    %693 = vmatpush1.msra.mxu0 0.0
    %694 = vmatprep.subr.mxu0 0.0
    %695 = vmatpush1.msra.mxu0 0.0
    %696 = vmatprep.subr.mxu0 0.0
    %697 = vmatpush1.msra.mxu0 0.0
    %698 = vmatprep.subr.mxu0 0.0
    %699 = vmatpush1.msra.mxu0 0.0
    %700 = vmatprep.subr.mxu0 0.0
    %701 = vmatpush1.msra.mxu0 0.0
    %702 = vmatprep.subr.mxu0 0.0
    %703 = vmatpush1.msra.mxu0 0.0
    %704 = vmatprep.subr.mxu0 0.0
    %705 = vmatpush1.msra.mxu0 0.0
    %706 = vmatprep.subr.mxu0 0.0
    %707 = vmatpush1.msra.mxu0 0.0
    %708 = vmatprep.subr.mxu0 0.0
    %709 = vmatpush1.msra.mxu0 0.0
    %710 = vmatprep.subr.mxu0 0.0
    %711 = vmatpush1.msra.mxu0 0.0
    %712 = vmatprep.subr.mxu0 0.0
    %713 = vmatpush1.msra.mxu0 0.0
    %714 = vmatprep.subr.mxu0 0.0
    %715 = vmatpush1.msra.mxu0 0.0
    %716 = vmatprep.subr.mxu0 0.0
    %717 = vmatpush1.msra.mxu0 0.0
    %718 = vmatprep.subr.mxu0 0.0
    %719 = vmatpush1.msra.mxu0 0.0
    %720 = vmatprep.subr.mxu0 0.0
    %721 = vmatpush1.msra.mxu0 0.0
    %722 = vmatprep.mubr.f32.mxu0 0.0
    %723 = vmatmul.mubr.f32.gmra.mrb[0].mxu0 %v656
    %v724 = vpop.f32.mrb[0].mxu0
    %v725 = vadd.f32 0.0, %v724
    %v726 = vpop.f32.mrb[0].mxu0
    %v727 = vadd.f32 0.0, %v726
    %728 = vdwg.mxu0
    %v729 = vadd.f32 %v464, %v725
    %v730 = vadd.f32 %v465, %v727
    %v731 = vld [vmem:[%s10] sm:$0xf]
    %733 = vset.pattern.permute.xlu0 0
    %734 = vperm.xlu0 %733, %v731
    %v735 = vpop.permute.xlu0 %734
    %v737 = vadd.f32 %v729, %v735
    %v738 = vadd.f32 %v730, %v735
    %739 = vst [vmem:[%s12] sm:$0xf] %v737
    %740 = vst [vmem:[%s12 + $0x8] sm:$0xf] %v738
    %v741 = vsub.f32 %v737, %v43
    %v742 = vsub.f32 %v738, %v44
    %v743 = vmul.f32 %v741, %v741
    %v744 = vmul.f32 %v742, %v742
    %v745 = vsel %vm509, %v743, 0.0
    %v746 = vsel %vm509, %v744, 0.0
    %v747 = vadd.f32 %v745, %v746
    %748 = vadd.xlane.f32.xlu0 %v747
    %v749 = vpop.xlane.xlu0 %748
    %v750 = vrot.slane %v749, 4
    %v751 = vadd.f32 %v749, %v750
    %v752 = vrot.slane %v751, 2
    %v753 = vadd.f32 %v751, %v752
    %v754 = vrot.slane %v753, 1
    %v755 = vadd.f32 %v753, %v754
    %s756 = vtos %v755
    %s757 = sadd.f32 %s756, 0.0
    %v758 = vld [vmem:[%s6] sm:$0xff]
    %v759 = vld [vmem:[%s6 + $0x8] sm:$0xff]
    %v760 = vld [vmem:[%s6 + $0x10] sm:$0xff]
    %v761 = vld [vmem:[%s6 + $0x18] sm:$0xff]
    %v762 = vld [vmem:[%s7] sm:$0xff]
    %v763 = vld [vmem:[%s7 + $0x8] sm:$0xff]
    %v764 = vld [vmem:[%s7 + $0x10] sm:$0xff]
    %v765 = vld [vmem:[%s7 + $0x18] sm:$0xff]
    %767 = vset.pattern.permute.xlu0 0
    %768 = vperm.xlu0 %767, %v762
    %v769 = vpop.permute.xlu0 %768
    %772 = vset.pattern.permute.xlu0 0
    %773 = vperm.xlu0 %772, %v763
    %v774 = vpop.permute.xlu0 %773
    %777 = vset.pattern.permute.xlu0 0
    %778 = vperm.xlu0 %777, %v764
    %v779 = vpop.permute.xlu0 %778
    %782 = vset.pattern.permute.xlu0 0
    %783 = vperm.xlu0 %782, %v765
    %v784 = vpop.permute.xlu0 %783
    %v786 = vrot.slane %v464, 4
    %v787 = vrot.slane %v465, 4
    %v789 = vsel %vm496, %v758, 0
    %v792 = vsel %vm496, %v759, 0
    %v795 = vsel %vm496, %v760, 0
    %v798 = vsel %vm496, %v761, 0
    %v800 = vsel %vm509, %v786, 0
    %v802 = vsel %vm509, %v787, 0
    %804 = vmatprep.subr.mxu0 %v802
    %805 = vmatpush1.msra.mxu0 %v800
    %806 = vmatprep.subr.mxu0 0.0
    %807 = vmatpush1.msra.mxu0 0.0
    %808 = vmatprep.subr.mxu0 0.0
    %809 = vmatpush1.msra.mxu0 0.0
    %810 = vmatprep.subr.mxu0 0.0
    %811 = vmatpush1.msra.mxu0 0.0
    %812 = vmatprep.subr.mxu0 0.0
    %813 = vmatpush1.msra.mxu0 0.0
    %814 = vmatprep.subr.mxu0 0.0
    %815 = vmatpush1.msra.mxu0 0.0
    %816 = vmatprep.subr.mxu0 0.0
    %817 = vmatpush1.msra.mxu0 0.0
    %818 = vmatprep.subr.mxu0 0.0
    %819 = vmatpush1.msra.mxu0 0.0
    %820 = vmatprep.subr.mxu0 0.0
    %821 = vmatpush1.msra.mxu0 0.0
    %822 = vmatprep.subr.mxu0 0.0
    %823 = vmatpush1.msra.mxu0 0.0
    %824 = vmatprep.subr.mxu0 0.0
    %825 = vmatpush1.msra.mxu0 0.0
    %826 = vmatprep.subr.mxu0 0.0
    %827 = vmatpush1.msra.mxu0 0.0
    %828 = vmatprep.subr.mxu0 0.0
    %829 = vmatpush1.msra.mxu0 0.0
    %830 = vmatprep.subr.mxu0 0.0
    %831 = vmatpush1.msra.mxu0 0.0
    %832 = vmatprep.subr.mxu0 0.0
    %833 = vmatpush1.msra.mxu0 0.0
    %834 = vmatprep.subr.mxu0 0.0
    %835 = vmatpush1.msra.mxu0 0.0
    %836 = vmatprep.subr.mxu0 0.0
    %837 = vmatpush1.msra.mxu0 0.0
    %838 = vmatprep.subr.mxu0 0.0
    %839 = vmatpush1.msra.mxu0 0.0
    %840 = vmatprep.subr.mxu0 0.0
    %841 = vmatpush1.msra.mxu0 0.0
    %842 = vmatprep.subr.mxu0 0.0
    %843 = vmatpush1.msra.mxu0 0.0
    %844 = vmatprep.subr.mxu0 0.0
    %845 = vmatpush1.msra.mxu0 0.0
    %846 = vmatprep.subr.mxu0 0.0
    %847 = vmatpush1.msra.mxu0 0.0
    %848 = vmatprep.subr.mxu0 0.0
    %849 = vmatpush1.msra.mxu0 0.0
    %850 = vmatprep.subr.mxu0 0.0
    %851 = vmatpush1.msra.mxu0 0.0
    %852 = vmatprep.subr.mxu0 0.0
    %853 = vmatpush1.msra.mxu0 0.0
    %854 = vmatprep.subr.mxu0 0.0
    %855 = vmatpush1.msra.mxu0 0.0
    %856 = vmatprep.subr.mxu0 0.0
    %857 = vmatpush1.msra.mxu0 0.0
    %858 = vmatprep.subr.mxu0 0.0
    %859 = vmatpush1.msra.mxu0 0.0
    %860 = vmatprep.subr.mxu0 0.0
    %861 = vmatpush1.msra.mxu0 0.0
    %862 = vmatprep.subr.mxu0 0.0
    %863 = vmatpush1.msra.mxu0 0.0
    %864 = vmatprep.subr.mxu0 0.0
    %865 = vmatpush1.msra.mxu0 0.0
    %866 = vmatprep.subr.mxu0 0.0
    %867 = vmatpush1.msra.mxu0 0.0
    %868 = vmatprep.mubr.f32.mxu0 0.0
    %869 = vmatmul.mubr.f32.gmra.mrb[0].mxu0 %v789
    %v870 = vpop.f32.mrb[0].mxu0
    %v871 = vadd.f32 %v769, %v870
    %v872 = vpop.f32.mrb[0].mxu0
    %v873 = vadd.f32 %v769, %v872
    %874 = vmatprep.mubr.f32.mxu0 0.0
    %875 = vmatmul.mubr.f32.gmra.mrb[0].mxu0 %v792
    %v876 = vpop.f32.mrb[0].mxu0
    %v877 = vadd.f32 %v774, %v876
    %v878 = vpop.f32.mrb[0].mxu0
    %v879 = vadd.f32 %v774, %v878
    %880 = vmatprep.mubr.f32.mxu0 0.0
    %881 = vmatmul.mubr.f32.gmra.mrb[0].mxu0 %v795
    %v882 = vpop.f32.mrb[0].mxu0
    %v883 = vadd.f32 %v779, %v882
    %v884 = vpop.f32.mrb[0].mxu0
    %v885 = vadd.f32 %v779, %v884
    %886 = vmatprep.mubr.f32.mxu0 0.0
    %887 = vmatmul.mubr.f32.gmra.mrb[0].mxu0 %v798
    %v888 = vpop.f32.mrb[0].mxu0
    %v889 = vadd.f32 %v784, %v888
    %v890 = vpop.f32.mrb[0].mxu0
    %v891 = vadd.f32 %v784, %v890
    %892 = vdwg.mxu0
    %v893 = vld [vmem:[%s8] sm:$0xff]
    %v894 = vld [vmem:[%s8 + $0x8] sm:$0xff]
    %v895 = vld [vmem:[%s8 + $0x10] sm:$0xff]
    %v896 = vld [vmem:[%s8 + $0x18] sm:$0xff]
    %v897 = vlaneseq
    %v898 = vshrl.u32 %v897, 7
    %v899 = vsub.s32 4, %v898
    %v900 = vrot.slane %v439, %v899
    %v901 = vmul.f32 %v900, %v893
    %v902 = vmul.f32 %v900, %v894
    %v903 = vmul.f32 %v900, %v895
    %v904 = vmul.f32 %v900, %v896
    %906 = vset.pattern.permute.xlu0 0
    %907 = vperm.xlu0 %906, %v901
    %v908 = vpop.permute.xlu0 %907
    %911 = vset.pattern.permute.xlu0 0
    %912 = vperm.xlu0 %911, %v902
    %v913 = vpop.permute.xlu0 %912
    %916 = vset.pattern.permute.xlu0 0
    %917 = vperm.xlu0 %916, %v903
    %v918 = vpop.permute.xlu0 %917
    %921 = vset.pattern.permute.xlu0 0
    %922 = vperm.xlu0 %921, %v904
    %v923 = vpop.permute.xlu0 %922
    %v925 = vadd.f32 %v871, %v908
    %v926 = vadd.f32 %v873, %v908
    %v927 = vadd.f32 %v877, %v913
    %v928 = vadd.f32 %v879, %v913
    %v929 = vadd.f32 %v883, %v918
    %v930 = vadd.f32 %v885, %v918
    %v931 = vadd.f32 %v889, %v923
    %v932 = vadd.f32 %v891, %v923
    %v933 = vmax.f32 %v925, 0.0
    %v934 = vmax.f32 %v926, 0.0
    %v935 = vmax.f32 %v927, 0.0
    %v936 = vmax.f32 %v928, 0.0
    %v937 = vmax.f32 %v929, 0.0
    %v938 = vmax.f32 %v930, 0.0
    %v939 = vmax.f32 %v931, 0.0
    %v940 = vmax.f32 %v932, 0.0
    %v941 = vld [vmem:[%s9] sm:$0xf]
    %v943 = vsel %vm654, %v941, 0
    %945 = vmatprep.subr.mxu0 %v934
    %946 = vmatpush1.msra.mxu0 %v933
    %947 = vmatprep.subr.mxu0 %v936
    %948 = vmatpush1.msra.mxu0 %v935
    %949 = vmatprep.subr.mxu0 %v938
    %950 = vmatpush1.msra.mxu0 %v937
    %951 = vmatprep.subr.mxu0 %v940
    %952 = vmatpush1.msra.mxu0 %v939
    %953 = vmatprep.subr.mxu0 0.0
    %954 = vmatpush1.msra.mxu0 0.0
    %955 = vmatprep.subr.mxu0 0.0
    %956 = vmatpush1.msra.mxu0 0.0
    %957 = vmatprep.subr.mxu0 0.0
    %958 = vmatpush1.msra.mxu0 0.0
    %959 = vmatprep.subr.mxu0 0.0
    %960 = vmatpush1.msra.mxu0 0.0
    %961 = vmatprep.subr.mxu0 0.0
    %962 = vmatpush1.msra.mxu0 0.0
    %963 = vmatprep.subr.mxu0 0.0
    %964 = vmatpush1.msra.mxu0 0.0
    %965 = vmatprep.subr.mxu0 0.0
    %966 = vmatpush1.msra.mxu0 0.0
    %967 = vmatprep.subr.mxu0 0.0
    %968 = vmatpush1.msra.mxu0 0.0
    %969 = vmatprep.subr.mxu0 0.0
    %970 = vmatpush1.msra.mxu0 0.0
    %971 = vmatprep.subr.mxu0 0.0
    %972 = vmatpush1.msra.mxu0 0.0
    %973 = vmatprep.subr.mxu0 0.0
    %974 = vmatpush1.msra.mxu0 0.0
    %975 = vmatprep.subr.mxu0 0.0
    %976 = vmatpush1.msra.mxu0 0.0
    %977 = vmatprep.subr.mxu0 0.0
    %978 = vmatpush1.msra.mxu0 0.0
    %979 = vmatprep.subr.mxu0 0.0
    %980 = vmatpush1.msra.mxu0 0.0
    %981 = vmatprep.subr.mxu0 0.0
    %982 = vmatpush1.msra.mxu0 0.0
    %983 = vmatprep.subr.mxu0 0.0
    %984 = vmatpush1.msra.mxu0 0.0
    %985 = vmatprep.subr.mxu0 0.0
    %986 = vmatpush1.msra.mxu0 0.0
    %987 = vmatprep.subr.mxu0 0.0
    %988 = vmatpush1.msra.mxu0 0.0
    %989 = vmatprep.subr.mxu0 0.0
    %990 = vmatpush1.msra.mxu0 0.0
    %991 = vmatprep.subr.mxu0 0.0
    %992 = vmatpush1.msra.mxu0 0.0
    %993 = vmatprep.subr.mxu0 0.0
    %994 = vmatpush1.msra.mxu0 0.0
    %995 = vmatprep.subr.mxu0 0.0
    %996 = vmatpush1.msra.mxu0 0.0
    %997 = vmatprep.subr.mxu0 0.0
    %998 = vmatpush1.msra.mxu0 0.0
    %999 = vmatprep.subr.mxu0 0.0
    %1000 = vmatpush1.msra.mxu0 0.0
    %1001 = vmatprep.subr.mxu0 0.0
    %1002 = vmatpush1.msra.mxu0 0.0
    %1003 = vmatprep.subr.mxu0 0.0
    %1004 = vmatpush1.msra.mxu0 0.0
    %1005 = vmatprep.subr.mxu0 0.0
    %1006 = vmatpush1.msra.mxu0 0.0
    %1007 = vmatprep.subr.mxu0 0.0
    %1008 = vmatpush1.msra.mxu0 0.0
    %1009 = vmatprep.mubr.f32.mxu0 0.0
    %1010 = vmatmul.mubr.f32.gmra.mrb[0].mxu0 %v943
    %v1011 = vpop.f32.mrb[0].mxu0
    %v1012 = vadd.f32 0.0, %v1011
    %v1013 = vpop.f32.mrb[0].mxu0
    %v1014 = vadd.f32 0.0, %v1013
    %1015 = vdwg.mxu0
    %v1018 = vrot.slane %v1012, 4
    %v1019 = vrot.slane %v1014, 4
    %v1022 = vadd.f32 %v464, %v1018
    %v1023 = vadd.f32 %v465, %v1019
    %v1024 = vld [vmem:[%s10] sm:$0xf]
    %1026 = vset.pattern.permute.xlu0 0
    %1027 = vperm.xlu0 %1026, %v1024
    %v1028 = vpop.permute.xlu0 %1027
    %v1029 = vrot.slane %v1028, 4
    %v1031 = vadd.f32 %v1022, %v1029
    %v1032 = vadd.f32 %v1023, %v1029
    %1033 = vst [vmem:[%s12] sm:$0xf0] %v1031
    %1034 = vst [vmem:[%s12 + $0x8] sm:$0xf0] %v1032
    %v1035 = vsub.f32 %v1031, %v43
    %v1036 = vsub.f32 %v1032, %v44
    %v1037 = vmul.f32 %v1035, %v1035
    %v1038 = vmul.f32 %v1036, %v1036
    %v1041 = vrot.slane %v1037, 4
    %v1042 = vrot.slane %v1038, 4
    %v1045 = vsel %vm509, %v1041, 0.0
    %v1046 = vsel %vm509, %v1042, 0.0
    %v1047 = vadd.f32 %v1045, %v1046
    %1048 = vadd.xlane.f32.xlu0 %v1047
    %v1049 = vpop.xlane.xlu0 %1048
    %v1050 = vrot.slane %v1049, 4
    %v1051 = vadd.f32 %v1049, %v1050
    %v1052 = vrot.slane %v1051, 2
    %v1053 = vadd.f32 %v1051, %v1052
    %v1054 = vrot.slane %v1053, 1
    %v1055 = vadd.f32 %v1053, %v1054
    %s1056 = vtos %v1055
    %s1057 = sadd.f32 %s757, %s1056
    %s1058 = smul.f32 %s1057, 0.00048828125
    %s1059 = scalar_lea.smem [#allocation3], 0
    %1060 = sst [smem:[%s1059]] %s1058
    // Predicated region
    $region46: #{gaussian_diffusion_forward.17} parent=1 // pred_check
      _
    $region47: #{gaussian_diffusion_forward.17} parent=1 // pred_check_branch
      %1062 = sbr.rel (0) target = $region49
    $region48: #{gaussian_diffusion_forward.17} parent=1 // pred_region
      _
    $region49: #{gaussian_diffusion_forward.17} parent=1 // pred_fallthru
      _
    // Predicated region
    $region50: #{gaussian_diffusion_forward.17} parent=1 // pred_check
      _
    $region51: #{gaussian_diffusion_forward.17} parent=1 // pred_check_branch
      %1064 = sbr.rel (0) target = $region53
    $region52: #{gaussian_diffusion_forward.17} parent=1 // pred_region
      _
    $region53: #{gaussian_diffusion_forward.17} parent=1 // pred_fallthru
      _
    // Predicated region
    $region54: #{gaussian_diffusion_forward.17} parent=1 // pred_check
      _
    $region55: #{gaussian_diffusion_forward.17} parent=1 // pred_check_branch
      %1066 = sbr.rel (0) target = $region57
    $region56: #{gaussian_diffusion_forward.17} parent=1 // pred_region
      %s1068 = ssub.s32 16, 16
      %1069 = vsyncadd [#allocation4], %s1068
      %1072 = dma.smem_to_hbm [#allocation3], 16, %s13, [#allocation4]
    $region57: #{gaussian_diffusion_forward.17} parent=1 // pred_fallthru
      _
    // Predicated region
    $region58: #{gaussian_diffusion_forward.17} parent=1 // pred_check
      _
    $region59: #{gaussian_diffusion_forward.17} parent=1 // pred_check_branch
      %1074 = sbr.rel (0) target = $region61
    $region60: #{gaussian_diffusion_forward.17} parent=1 // pred_region
      _
    $region61: #{gaussian_diffusion_forward.17} parent=1 // pred_fallthru
      _
    // Predicated region
    $region62: #{gaussian_diffusion_forward.17} parent=1 // pred_check
      _
    $region63: #{gaussian_diffusion_forward.17} parent=1 // pred_check_branch
      %1076 = sbr.rel (0) target = $region65
    $region64: #{gaussian_diffusion_forward.17} parent=1 // pred_region
      _
    $region65: #{gaussian_diffusion_forward.17} parent=1 // pred_fallthru
      _
    // Predicated region
    $region66: #{gaussian_diffusion_forward.17} parent=1 // pred_check
      _
    $region67: #{gaussian_diffusion_forward.17} parent=1 // pred_check_branch
      %1078 = sbr.rel (0) target = $region69
    $region68: #{gaussian_diffusion_forward.17} parent=1 // pred_region
      %1079 = dma.done [#allocation4], 16
    $region69: #{gaussian_diffusion_forward.17} parent=1 // pred_fallthru
      _
    %1080 = sfence
    %1081 = vsyncpa [#allocation4], 1

</llo_original>
